<compile_context>
chip_gen: v6e
topology: v6e:2x2x1
jax: 0.10.0
libtpu: 0.0.40
codegen_flags: <defaults>
</compile_context>

<pallas_src>
import math
import functools

import jax
import jax.numpy as jnp
from jax.experimental import pallas as pl
from jax.experimental.pallas import tpu as pltpu

_SQRT_HALF = 1.0 / math.sqrt(2.0)


# ---------------------------------------------------------------------------
# Kernel
# ---------------------------------------------------------------------------
def adapter_kernel(x_ref, wd_ref, bd_ref, wu_ref, bu_ref, o_ref, act_ref):
    """Fused down-proj -> exact (erf) GELU -> up-proj for one (row, H) tile."""

    @pl.when(pl.program_id(1) == 0)
    def _():
        # down projection: [bm, H] @ [H, D] -> f32 [bm, D]
        down = jnp.dot(x_ref[...], wd_ref[...],
                       preferred_element_type=jnp.float32)
        down = down + bd_ref[...].astype(jnp.float32)
        # exact GELU (erf-based, matches torch.nn.GELU() default), in f32
        act_ref[...] = 0.5 * down * (
            1.0 + jax.lax.erf(down * jnp.float32(_SQRT_HALF)))

    act = act_ref[...]
    # up projection: [bm, D] @ [D, tn] -> f32 [bm, tn]
    up = jnp.dot(act.astype(wu_ref.dtype), wu_ref[...],
                 preferred_element_type=jnp.float32)
    up = up + bu_ref[...].astype(jnp.float32)
    o_ref[...] = up.astype(o_ref.dtype)


# ---------------------------------------------------------------------------
# Sizing helpers
# ---------------------------------------------------------------------------
def _round_up(x, m):
    return (x + m - 1) // m * m


def _vmem_capacity_bytes():
    """Per-generation VMEM capacity (v5e/v6e 128 MiB, v7x 64 MiB per TC)."""
    try:
        info = pltpu.get_tpu_info()
        for name in ("vmem_capacity_bytes", "vmem_size_bytes", "vmem_bytes"):
            v = getattr(info, name, None)
            if v:
                return int(v)
    except Exception:
        pass
    try:
        kind = jax.devices()[0].device_kind.lower()
        if "v7" in kind:
            return 64 * 1024 * 1024
        return 128 * 1024 * 1024  # v4 / v5e / v5p / v6e
    except Exception:
        return 64 * 1024 * 1024


def _vmem_usage_bytes(bm, tn, H, D, io_bytes, w_bytes, single_buffer_weights,
                      n_h_tiles):
    """Rough VMEM footprint for tile sizes (bm, tn)."""
    # Activation row tile in / output slab out, double-buffered by the pipeline.
    act_io = 2 * bm * H * io_bytes + 2 * bm * tn * io_bytes
    # Grid-invariant W_down (+ f32 bias): single-buffered when Buffered(1) is
    # honored; W_up / b_up are only invariant when H is untiled.
    wd_buf = 1 if single_buffer_weights else 2
    wu_buf = wd_buf if n_h_tiles == 1 else 2
    weights = (wd_buf * (H * D * w_bytes + D * 4)
               + wu_buf * (D * tn * w_bytes + tn * 4))
    # f32 GELU-activation scratch + in-kernel f32 intermediates.
    scratch = bm * D * 4
    interm = bm * tn * 4 + bm * D * 4
    return act_io + weights + scratch + interm


def _pick_tiles(M, H, D, io_bytes, w_bytes, budget, single_buffer_weights,
                block_m=None, block_n=None):
    """Pick (bm, tn): maximize the row tile (mem-bound kernels reach ~30% of
    the HBM roofline at 128-row tiles vs ~85% at 512+), prefer untiled H, and
    cap bm so the parallel row axis keeps >= ~4 grid steps (>= 2 per
    TensorCore on v7x megacore)."""
    row_align = 16 if io_bytes <= 2 else 8
    m_ceil = _round_up(M, row_align)
    bm_cap = min(m_ceil, max(row_align, _round_up(pl.cdiv(M, 4), row_align)))

    if block_m is not None:
        bm_cands = [max(row_align, min(_round_up(block_m, row_align), m_ceil))]
    else:
        bm_cands = [c for c in (2048, 1024, 512, 256, 128, 64, 32, 16, 8)
                    if c % row_align == 0 and c <= bm_cap]
        if not bm_cands:
            bm_cands = [min(m_ceil, bm_cap)]

    if block_n is not None:
        tn_cands = [min(block_n, H)]
    else:
        tn_cands = [H] + [t for t in (1024, 512, 256, 128) if t < H]

    best = None
    for tn in tn_cands:
        n_h = pl.cdiv(H, tn)
        for bm in bm_cands:  # descending
            if _vmem_usage_bytes(bm, tn, H, D, io_bytes, w_bytes,
                                 single_buffer_weights, n_h) <= budget:
                if best is None or bm > best[0]:
                    best = (bm, tn)
                break
    if best is None:  # nothing fit the budget: smallest tiles we have
        best = (bm_cands[-1], tn_cands[-1])
    return best


def _probe_buffered1_support():
    """Check whether this JAX/Mosaic build honors pipeline_mode=pl.Buffered(1)
    with a tiny throwaway kernel (so a VMEM failure in the real kernel is never
    misclassified as missing pipeline_mode support)."""
    try:
        def _k(x_ref, o_ref):
            o_ref[...] = x_ref[...] + 1.0

        f = pl.pallas_call(
            _k,
            out_shape=jax.ShapeDtypeStruct((8, 128), jnp.float32),
            grid=(1,),
            in_specs=[pl.BlockSpec((8, 128), lambda i: (0, 0),
                                   pipeline_mode=pl.Buffered(1))],
            out_specs=pl.BlockSpec((8, 128), lambda i: (0, 0)),
        )
        jax.block_until_ready(f(jnp.zeros((8, 128), jnp.float32)))
        return True
    except Exception:
        return False


# ---------------------------------------------------------------------------
# pallas_call wrapper
# ---------------------------------------------------------------------------
@functools.partial(
    jax.jit,
    static_argnames=("block_m", "block_n", "single_buffer_weights",
                     "vmem_limit_bytes"))
def _adapter_forward_impl(x, w_down, b_down, w_up, b_up, *, block_m, block_n,
                          single_buffer_weights, vmem_limit_bytes):
    B, S, H = x.shape
    D = w_down.shape[1]
    M = B * S
    bm, tn = block_m, block_n

    # Rows on sublanes, hidden on lanes.  No HBM-side pad/slice: reshape of a
    # contiguous array is a free bitcast and Pallas masks the ragged last
    # row/H block, so x and y move over HBM exactly once.
    x2 = x.reshape(M, H)
    grid = (pl.cdiv(M, bm), pl.cdiv(H, tn))
    n_h = grid[1]

    def invariant_spec(shape, index_map):
        # Grid-invariant blocks are fetched once; a single VMEM buffer
        # suffices and frees VMEM for a larger row tile.
        if single_buffer_weights:
            return pl.BlockSpec(shape, index_map, pipeline_mode=pl.Buffered(1))
        return pl.BlockSpec(shape, index_map)

    wd_spec = invariant_spec((H, D), lambda i, j: (0, 0))
    bd_spec = invariant_spec((1, D), lambda i, j: (0, 0))
    if n_h == 1:
        wu_spec = invariant_spec((D, tn), lambda i, j: (0, j))
        bu_spec = invariant_spec((1, tn), lambda i, j: (0, j))
    else:
        wu_spec = pl.BlockSpec((D, tn), lambda i, j: (0, j))
        bu_spec = pl.BlockSpec((1, tn), lambda i, j: (0, j))

    out2 = pl.pallas_call(
        adapter_kernel,
        out_shape=jax.ShapeDtypeStruct((M, H), x.dtype),
        grid_spec=pltpu.PrefetchScalarGridSpec(
            num_scalar_prefetch=0,
            grid=grid,
            in_specs=[
                pl.BlockSpec((bm, H), lambda i, j: (i, 0)),  # activation rows
                wd_spec,                                     # W_down (resident)
                bd_spec,                                     # b_down (f32)
                wu_spec,                                     # W_up block
                bu_spec,                                     # b_up block (f32)
            ],
            out_specs=pl.BlockSpec((bm, tn), lambda i, j: (i, j)),
            scratch_shapes=[pltpu.VMEM((bm, D), jnp.float32)],
        ),
        compiler_params=pltpu.CompilerParams(
            # Row tiles are independent -> shard across v7x's 2 TensorCores;
            # the H axis carries the activation scratch -> arbitrary.
            dimension_semantics=("parallel", "arbitrary"),
            vmem_limit_bytes=vmem_limit_bytes,
        ),
    )(x2, w_down, b_down, w_up, b_up)

    return out2.reshape(B, S, H)


_BUFFERED1_SUPPORTED = None  # lazily probed once per process


def adapter_forward(x, w_down, b_down, w_up, b_up, block_m=None, block_n=None):
    """x: [B, S, H]; w_down: [H, D]; b_down: [1, D]; w_up: [D, H]; b_up: [1, H].

    x / weights may be bf16 (recommended for real sizes -- halves HBM traffic,
    the binding resource, especially on v5e; keep H a multiple of 128 so output
    stores stay lane-dense).  Biases are promoted to f32 (negligible bytes);
    accumulation, bias adds and the exact erf-GELU are f32 inside the kernel.
    """
    global _BUFFERED1_SUPPORTED
    B, S, H = x.shape
    D = w_down.shape[1]
    io_bytes = jnp.dtype(x.dtype).itemsize
    w_bytes = jnp.dtype(w_down.dtype).itemsize

    # Biases are only D + H elements: keep them f32 for an exactly-f32 bias add.
    b_down = b_down.astype(jnp.float32)
    b_up = b_up.astype(jnp.float32)

    if _BUFFERED1_SUPPORTED is None:
        _BUFFERED1_SUPPORTED = _probe_buffered1_support()

    # Leave headroom below physical VMEM for Mosaic-internal scratch, and size
    # the tiles against a further-discounted budget.
    capacity = _vmem_capacity_bytes()
    vmem_limit = int(max(capacity - 8 * 1024 * 1024, capacity // 2))
    tile_budget = int(0.85 * vmem_limit)

    bm, tn = _pick_tiles(B * S, H, D, io_bytes, w_bytes, tile_budget,
                         _BUFFERED1_SUPPORTED, block_m, block_n)
    kwargs = dict(single_buffer_weights=_BUFFERED1_SUPPORTED,
                  vmem_limit_bytes=vmem_limit)
    try:
        return _adapter_forward_impl(x, w_down, b_down, w_up, b_up,
                                     block_m=bm, block_n=tn, **kwargs)
    except Exception:
        # Last-resort safety net (unexpected VMEM pressure): retry once with
        # conservative tiles; correctness unaffected, only speed.
        row_align = 16 if io_bytes <= 2 else 8
        bm_fb = max(row_align, min(bm, 128))
        tn_fb = tn if tn == H else min(tn, 128)
        if (bm_fb, tn_fb) == (bm, tn):
            raise
        return _adapter_forward_impl(x, w_down, b_down, w_up, b_up,
                                     block_m=bm_fb, block_n=tn_fb, **kwargs)


# ---------------------------------------------------------------------------
# Reference / test harness
# ---------------------------------------------------------------------------
def init_linear_params(key, in_features, out_features, dtype=jnp.float32):
    """torch.nn.Linear-style init (uniform +-1/sqrt(in_features)); weight is
    returned pre-transposed as (in, out), bias as (1, out)."""
    kw, kb = jax.random.split(key)
    bound = 1.0 / math.sqrt(in_features)
    w = jax.random.uniform(kw, (in_features, out_features), dtype,
                           minval=-bound, maxval=bound)
    b = jax.random.uniform(kb, (1, out_features), dtype,
                           minval=-bound, maxval=bound)
    return w, b


def reference_forward(x, w_down, b_down, w_up, b_up):
    down = jnp.einsum("bsh,hd->bsd", x, w_down) + b_down.reshape(-1)
    act = jax.nn.gelu(down, approximate=False)
    return jnp.einsum("bsd,dh->bsh", act, w_up) + b_up.reshape(-1)


if __name__ == "__main__":
    # Small shapes consistent with the module: batch=2, seq=8, hidden=32, bottleneck=16
    B, S, H, D = 2, 8, 32, 16

    key = jax.random.PRNGKey(0)
    kx, kdown, kup = jax.random.split(key, 3)

    x = jax.random.normal(kx, (B, S, H), dtype=jnp.float32)
    w_down, b_down = init_linear_params(kdown, H, D)
    w_up, b_up = init_linear_params(kup, D, H)

    # 1) f32 path: parity with the torch module (erf GELU, f32 math).
    out = jax.block_until_ready(adapter_forward(x, w_down, b_down, w_up, b_up))
    ref = reference_forward(x, w_down, b_down, w_up, b_up)
    assert out.shape == (B, S, H)
    assert jnp.allclose(out, ref, atol=1e-5, rtol=1e-5)

    # 2) bf16 I/O path (the recommended bandwidth-bound configuration): bf16
    #    streaming of x / weights, f32 biases / accumulation / GELU in-kernel.
    xb = x.astype(jnp.bfloat16)
    wdb = w_down.astype(jnp.bfloat16)
    wub = w_up.astype(jnp.bfloat16)
    out_b = jax.block_until_ready(adapter_forward(xb, wdb, b_down, wub, b_up))
    ref_b = reference_forward(xb.astype(jnp.float32), wdb.astype(jnp.float32),
                              b_down, wub.astype(jnp.float32), b_up)
    assert out_b.shape == (B, S, H)
    assert jnp.allclose(out_b.astype(jnp.float32), ref_b, atol=5e-2, rtol=5e-2)

    # 3) Forced H-tiled path: exercises the (row, H-tile) grid + activation
    #    scratch reuse that large-H / v7x shapes select automatically.
    Bh, Sh, Hh, Dh = 2, 64, 256, 128
    kx2, kd2, ku2 = jax.random.split(jax.random.PRNGKey(1), 3)
    x2 = jax.random.normal(kx2, (Bh, Sh, Hh), dtype=jnp.float32)
    wd2, bd2 = init_linear_params(kd2, Hh, Dh)
    wu2, bu2 = init_linear_params(ku2, Dh, Hh)
    out2 = jax.block_until_ready(
        adapter_forward(x2, wd2, bd2, wu2, bu2, block_m=64, block_n=128))
    ref2 = reference_forward(x2, wd2, bd2, wu2, bu2)
    assert out2.shape == (Bh, Sh, Hh)
    assert jnp.allclose(out2, ref2, atol=1e-3, rtol=1e-3)

    print("KERNEL_OK")
</pallas_src>

<mosaic_0001>
module attributes {stable_mosaic.version = 11 : i64} {
  func.func @_k(%arg0: i32, %arg1: memref<8x128xf32, #tpu.memory_space<vmem>>, %arg2: memref<8x128xf32, #tpu.memory_space<vmem>>) attributes {dimension_semantics = [#tpu.dimension_semantics<arbitrary>], iteration_bounds = array<i64: 1>, scalar_prefetch = 0 : i64, scratch_operands = 0 : i64, tpu.core_type = #tpu.core_type<tc>, window_params = [{pipeline_mode = #tpu.pipeline_mode<synchronous>, transform_indices = @transform_0, window_bounds = array<i64: 8, 128>}, {pipeline_mode = #tpu.pipeline_mode<synchronous>, transform_indices = @transform_1, window_bounds = array<i64: 8, 128>}]} {
    %c0 = arith.constant 0 : index
    %c0_0 = arith.constant 0 : index
    %0 = vector.load %arg1[%c0, %c0_0] : memref<8x128xf32, #tpu.memory_space<vmem>>, vector<8x128xf32>
    %cst = arith.constant 1.000000e+00 : f32
    %1 = vector.broadcast %cst : f32 to vector<8x128xf32>
    %2 = arith.addf %0, %1 : vector<8x128xf32>
    %c0_1 = arith.constant 0 : index
    %c0_2 = arith.constant 0 : index
    %3 = vector.load %arg2[%c0_1, %c0_2] : memref<8x128xf32, #tpu.memory_space<vmem>>, vector<8x128xf32>
    tpu.vector_store %arg2[%c0_1, %c0_2], %2 {strides = array<i32>} : memref<8x128xf32, #tpu.memory_space<vmem>>, vector<8x128xf32>,
    return
  }
  func.func @transform_0(%arg0: i32) -> (i32, i32) {
    %c0_i32 = arith.constant 0 : i32
    %c0_i32_0 = arith.constant 0 : i32
    %c0_i32_1 = arith.constant 0 : i32
    return %c0_i32, %c0_i32_0 : i32, i32
  }
  func.func @transform_1(%arg0: i32) -> (i32, i32) {
    %c0_i32 = arith.constant 0 : i32
    %c0_i32_0 = arith.constant 0 : i32
    %c0_i32_1 = arith.constant 0 : i32
    return %c0_i32, %c0_i32_0 : i32, i32
  }
}

module attributes {stable_mosaic.version = 11 : i64} {
  func.func @adapter_kernel(%arg0: i32, %arg1: i32, %arg2: memref<8x32xf32, #tpu.memory_space<vmem>>, %arg3: memref<32x16xf32, #tpu.memory_space<vmem>>, %arg4: memref<1x16xf32, #tpu.memory_space<vmem>>, %arg5: memref<16x32xf32, #tpu.memory_space<vmem>>, %arg6: memref<1x32xf32, #tpu.memory_space<vmem>>, %arg7: memref<8x32xf32, #tpu.memory_space<vmem>>, %arg8: memref<8x16xf32, #tpu.memory_space<vmem>>) attributes {dimension_semantics = [#tpu.dimension_semantics<parallel>, #tpu.dimension_semantics<arbitrary>], iteration_bounds = array<i64: 2, 1>, scalar_prefetch = 0 : i64, scratch_operands = 1 : i64, tpu.core_type = #tpu.core_type<tc>, window_params = [{transform_indices = @transform_0, window_bounds = array<i64: 8, 32>}, {pipeline_mode = #tpu.pipeline_mode<synchronous>, transform_indices = @transform_1, window_bounds = array<i64: 32, 16>}, {pipeline_mode = #tpu.pipeline_mode<synchronous>, transform_indices = @transform_2, window_bounds = array<i64: 1, 16>}, {transform_indices = @transform_3, window_bounds = array<i64: 16, 32>}, {transform_indices = @transform_4, window_bounds = array<i64: 1, 32>}, {transform_indices = @transform_5, window_bounds = array<i64: 8, 32>}]} {
    %c0_i32 = arith.constant 0 : i32
    %0 = arith.cmpi eq, %arg1, %c0_i32 : i32
    %1 = arith.extui %0 : i1 to i32
    %c0_i32_0 = arith.constant 0 : i32
    %2 = arith.cmpi ne, %1, %c0_i32_0 : i32
    scf.if %2 {
      %c0_8 = arith.constant 0 : index
      %c0_9 = arith.constant 0 : index
      %10 = vector.load %arg2[%c0_8, %c0_9] : memref<8x32xf32, #tpu.memory_space<vmem>>, vector<8x32xf32>
      %c0_10 = arith.constant 0 : index
      %c0_11 = arith.constant 0 : index
      %11 = vector.load %arg3[%c0_10, %c0_11] : memref<32x16xf32, #tpu.memory_space<vmem>>, vector<32x16xf32>
      %cst_12 = arith.constant dense<0.000000e+00> : vector<8x16xf32>
      %12 = tpu.matmul %10, %11, %cst_12 {dimension_numbers = #tpu.dot_dimension_numbers<[1], [0], [0], [1], [0, 0, 1, 1], [], []>} : vector<8x32xf32>, vector<32x16xf32>, vector<8x16xf32> -> vector<8x16xf32>
      %c0_13 = arith.constant 0 : index
      %c0_14 = arith.constant 0 : index
      %13 = vector.load %arg4[%c0_13, %c0_14] : memref<1x16xf32, #tpu.memory_space<vmem>>, vector<1x16xf32>
      %14 = vector.broadcast %13 : vector<1x16xf32> to vector<8x16xf32>
      %15 = arith.addf %12, %14 : vector<8x16xf32>
      %cst_15 = arith.constant 5.000000e-01 : f32
      %16 = vector.broadcast %cst_15 : f32 to vector<8x16xf32>
      %17 = arith.mulf %16, %15 : vector<8x16xf32>
      %cst_16 = arith.constant 0.707106769 : f32
      %18 = vector.broadcast %cst_16 : f32 to vector<8x16xf32>
      %19 = arith.mulf %15, %18 : vector<8x16xf32>
      %20 = math.erf %19 : vector<8x16xf32>
      %cst_17 = arith.constant 1.000000e+00 : f32
      %21 = vector.broadcast %cst_17 : f32 to vector<8x16xf32>
      %22 = arith.addf %21, %20 : vector<8x16xf32>
      %23 = arith.mulf %17, %22 : vector<8x16xf32>
      %c0_18 = arith.constant 0 : index
      %c0_19 = arith.constant 0 : index
      %24 = vector.load %arg8[%c0_18, %c0_19] : memref<8x16xf32, #tpu.memory_space<vmem>>, vector<8x16xf32>
      tpu.vector_store %arg8[%c0_18, %c0_19], %23 {strides = array<i32>} : memref<8x16xf32, #tpu.memory_space<vmem>>, vector<8x16xf32>,
    } else {
    }
    %c0 = arith.constant 0 : index
    %c0_1 = arith.constant 0 : index
    %3 = vector.load %arg8[%c0, %c0_1] : memref<8x16xf32, #tpu.memory_space<vmem>>, vector<8x16xf32>
    %c0_2 = arith.constant 0 : index
    %c0_3 = arith.constant 0 : index
    %4 = vector.load %arg5[%c0_2, %c0_3] : memref<16x32xf32, #tpu.memory_space<vmem>>, vector<16x32xf32>
    %cst = arith.constant dense<0.000000e+00> : vector<8x32xf32>
    %5 = tpu.matmul %3, %4, %cst {dimension_numbers = #tpu.dot_dimension_numbers<[1], [0], [0], [1], [0, 0, 1, 1], [], []>} : vector<8x16xf32>, vector<16x32xf32>, vector<8x32xf32> -> vector<8x32xf32>
    %c0_4 = arith.constant 0 : index
    %c0_5 = arith.constant 0 : index
    %6 = vector.load %arg6[%c0_4, %c0_5] : memref<1x32xf32, #tpu.memory_space<vmem>>, vector<1x32xf32>
    %7 = vector.broadcast %6 : vector<1x32xf32> to vector<8x32xf32>
    %8 = arith.addf %5, %7 : vector<8x32xf32>
    %c0_6 = arith.constant 0 : index
    %c0_7 = arith.constant 0 : index
    %9 = vector.load %arg7[%c0_6, %c0_7] : memref<8x32xf32, #tpu.memory_space<vmem>>, vector<8x32xf32>
    tpu.vector_store %arg7[%c0_6, %c0_7], %8 {strides = array<i32>} : memref<8x32xf32, #tpu.memory_space<vmem>>, vector<8x32xf32>,
    return
  }
  func.func @transform_0(%arg0: i32, %arg1: i32) -> (i32, i32) {
    %c0_i32 = arith.constant 0 : i32
    %c0_i32_0 = arith.constant 0 : i32
    return %arg0, %c0_i32 : i32, i32
  }
  func.func @transform_1(%arg0: i32, %arg1: i32) -> (i32, i32) {
    %c0_i32 = arith.constant 0 : i32
    %c0_i32_0 = arith.constant 0 : i32
    %c0_i32_1 = arith.constant 0 : i32
    return %c0_i32, %c0_i32_0 : i32, i32
  }
  func.func @transform_2(%arg0: i32, %arg1: i32) -> (i32, i32) {
    %c0_i32 = arith.constant 0 : i32
    %c0_i32_0 = arith.constant 0 : i32
    %c0_i32_1 = arith.constant 0 : i32
    return %c0_i32, %c0_i32_0 : i32, i32
  }
  func.func @transform_3(%arg0: i32, %arg1: i32) -> (i32, i32) {
    %c0_i32 = arith.constant 0 : i32
    %c0_i32_0 = arith.constant 0 : i32
    return %c0_i32, %arg1 : i32, i32
  }
  func.func @transform_4(%arg0: i32, %arg1: i32) -> (i32, i32) {
    %c0_i32 = arith.constant 0 : i32
    %c0_i32_0 = arith.constant 0 : i32
    return %c0_i32, %arg1 : i32, i32
  }
  func.func @transform_5(%arg0: i32, %arg1: i32) -> (i32, i32) {
    %c0_i32 = arith.constant 0 : i32
    return %arg0, %arg1 : i32, i32
  }
}

</mosaic_0001>

<llo_original>
// kernel: tpu_custom_call.1
$region0: #{tpu_custom_call.1}
  #allocation0 [shape = 'u32[]', space=smem, size = 0x4, offset = 0x4, fixed_abs, tag = 'smem constant byte address 0x4 - core index']
  #allocation1 [shape = 'u32[144,128]{1,0:T(1,128)}', space=vmem, size = 0x12000, scoped, tag = 'internal scratch']
  %s0 = inlined_call_operand.hbm [shape: f32[8,128], index: 0, kind: input, shape index: {}]
  %s1 = inlined_call_operand.hbm [shape: f32[8,128], index: 1, kind: output, shape index: {}]
  %s2 = sld [smem:[#allocation0]]
  $region18: #{tpu_custom_call.1} parent=0
    _
  %s4 = ssub.s32 1, %s2
  %s5 = scalar_select 0, %s4, %s2
  $region1: #{tpu_custom_call.1} parent=0
    #allocation2 [shape = 'u8[4096]{0}', space=vmem, size = 0x1000, scoped, tag = 'input window, operand 0, single buffered']
    #allocation3 [shape = 's32[1]{0}', space=sflag, size = 0x4, scoped, tag = 'scoped memory for tpu_custom_call.1']
    #allocation4 [shape = 's32[1]{0}', space=sflag, size = 0x4, scoped, tag = 'scoped memory for tpu_custom_call.1']
    #allocation5 [shape = 'u8[4096]{0}', space=vmem, size = 0x1000, scoped, tag = 'output window, operand 0, single buffered']
    %6 = vsyncpa [#allocation3], 0
    %7 = vsyncpa [#allocation4], 0
    // Predicated region
    $region2: #{tpu_custom_call.1} parent=1 // pred_check
      _
    $region3: #{tpu_custom_call.1} parent=1 // pred_check_branch
      %9 = sbr.rel (0) target = $region5
    $region4: #{tpu_custom_call.1} parent=1 // pred_region
      %s11 = ssub.s32 128, 128
      %12 = vsyncadd [#allocation3], %s11
      %s14 = sshll.u32 [#allocation2], 4
      %s15 = int_to_ptr.vmem [resolvable:$true] %s14
      %17 = dma.hbm_to_vmem [thread:$0]  %s0, 128, %s15, [#allocation3]
    $region5: #{tpu_custom_call.1} parent=1 // pred_fallthru
      _
    // Predicated region
    $region6: #{tpu_custom_call.1} parent=1 // pred_check
      _
    $region7: #{tpu_custom_call.1} parent=1 // pred_check_branch
      %19 = sbr.rel (0) target = $region9
    $region8: #{tpu_custom_call.1} parent=1 // pred_region
      %20 = dma.done [#allocation3], 128
    $region9: #{tpu_custom_call.1} parent=1 // pred_fallthru
      _
    %v21 = vld [vmem:[#allocation2] sm:$0xff]
    %v22 = vadd.f32 %v21, 1.0
    %23 = vst [vmem:[#allocation5] sm:$0xff] %v22
    // Predicated region
    $region10: #{tpu_custom_call.1} parent=1 // pred_check
      _
    $region11: #{tpu_custom_call.1} parent=1 // pred_check_branch
      %25 = sbr.rel (0) target = $region13
    $region12: #{tpu_custom_call.1} parent=1 // pred_region
      %s27 = ssub.s32 128, 128
      %28 = vsyncadd [#allocation4], %s27
      %s30 = sshll.u32 [#allocation5], 4
      %s31 = int_to_ptr.vmem [resolvable:$true] %s30
      %33 = dma.vmem_to_hbm [thread:$0]  %s31, 128, %s1, [#allocation4]
    $region13: #{tpu_custom_call.1} parent=1 // pred_fallthru
      _
    // Predicated region
    $region14: #{tpu_custom_call.1} parent=1 // pred_check
      _
    $region15: #{tpu_custom_call.1} parent=1 // pred_check_branch
      %35 = sbr.rel (0) target = $region17
    $region16: #{tpu_custom_call.1} parent=1 // pred_region
      %36 = dma.done [#allocation4], 128
    $region17: #{tpu_custom_call.1} parent=1 // pred_fallthru
      _
    %37 = vsyncpa [#allocation3], 1
    %38 = vsyncpa [#allocation4], 1

// kernel: _adapter_forward_impl.1
$region0: #{_adapter_forward_impl.1}
  #allocation0 [shape = 'u32[]', space=smem, size = 0x4, offset = 0x4, fixed_abs, tag = 'smem constant byte address 0x4 - core index']
  #allocation1 [shape = 'u32[144,128]{1,0:T(1,128)}', space=vmem, size = 0x12000, scoped, tag = 'internal scratch']
  #allocation2 [shape = 'f32[8,16]{1,0:T(8,128)}', space=vmem, size = 0x1000, scoped, tag = 'scratch operand']
  %s0 = inlined_call_operand.vmem [shape: f32[16,32], index: 0, kind: input, shape index: {}]
  %s1 = inlined_call_operand.vmem [shape: f32[32,16], index: 1, kind: input, shape index: {}]
  %s2 = inlined_call_operand.vmem [shape: f32[1,16], index: 2, kind: input, shape index: {}]
  %s3 = inlined_call_operand.vmem [shape: f32[16,32], index: 3, kind: input, shape index: {}]
  %s4 = inlined_call_operand.vmem [shape: f32[1,32], index: 4, kind: input, shape index: {}]
  %s5 = inlined_call_operand.hbm [shape: f32[16,32], index: 5, kind: output, shape index: {}]
  %s6 = sld [smem:[#allocation0]]
  $region57: #{_adapter_forward_impl.1} parent=0
    _
  %s8 = ssub.s32 1, %s6
  %s9 = scalar_select 0, %s8, %s6
  $region1: #{_adapter_forward_impl.1} parent=0
    #allocation3 [shape = 'u8[8192]{0}', space=vmem, size = 0x2000, scoped, tag = 'output window, operand 0']
    #allocation4 [shape = 's32[2]{0}', space=sflag, size = 0x8, scoped, tag = 'scoped memory for _adapter_forward_impl.1']
    %10 = vsyncpa [#allocation4], 0
    %s11 = scalar_lea.sflag [#allocation4], 1
    %12 = vsyncpa %s11, 0
    loop: start=0, step=1, limit=4
    $region2: #{_adapter_forward_impl.1} parent=1 // loop_pre_header
      _
    $region3: #{_adapter_forward_impl.1} parent=1 // loop_header
      %s14 = sphi 0, %s18
      %p15 = scmp.ge.s32.totalorder %s14, 4
      %s21 = sphi 0, %s33
      %s22 = sphi 0, %s29
      %s23 = sphi 0, %s21
      %s24 = sphi 0, %s22
      %s25 = sphi 0, %s23
      %s26 = sphi 0, %s24
      %s36 = sphi 0, %s38
      %s39 = sphi 0, %s36
      %s40 = sphi 0, %s39
      %s56 = sphi 0, %s40
      %s60 = sphi 0, %s60
      %s62 = sphi 0, %s60
      %s63 = sphi 0, %s62
      %s77 = sphi 0, %s63
      %s81 = sphi 0, %s81
      %s83 = sphi 0, %s81
      %s84 = sphi 0, %s83
      %s98 = sphi 0, %s84
      %s104 = sphi 0, %s106
      %s107 = sphi 0, %s104
      %s108 = sphi 0, %s107
      %s124 = sphi 0, %s108
      %s130 = sphi 0, %s132
      %s133 = sphi 0, %s130
      %s134 = sphi 0, %s133
      %s150 = sphi 0, %s134
      %s158 = sphi 0, %s160
      %s161 = sphi 0, %s158
      %s162 = sphi 0, %s161
      %s178 = sphi 0, %s162
    $region4: #{_adapter_forward_impl.1} parent=1 // loop_header_branch
      %17 = sbr.rel (%p15) target = $region8
    $region5: #{_adapter_forward_impl.1} parent=1 // loop_body
      %s19 = ssub.s32 %s14, 1
      %s20 = ssub.s32 %s14, 2
      %s27 = sadd.s32 1, %s22
      %p28 = scmp.ge.s32.totalorder %s27, 1
      %s29 = scalar_select %p28, 0, %s27
      %s30 = sadd.s32 1, %s21
      %s31 = scalar_select %p28, %s30, %s21
      %p32 = scmp.ge.s32.totalorder %s31, 2
      %s33 = scalar_select %p32, 0, %s31
      %s34 = ssub.s32 %s21, %s33
      %p35 = scmp.eq.s32.totalorder %s34, 0
      %s37 = sadd.s32 %s36, 1
      %s38 = scalar_select %p35, %s36, %s37
      %p41 = pneg %p35
      %p42 = scmp.eq.s32.totalorder %s14, 1
      %p43 = por %p41, %p42
      %p44 = scmp.ne.s32.totalorder %s36, %s39
      %p45 = scmp.eq.s32.totalorder %s14, 0
      %p46 = por %p44, %p45
      %p47 = scmp.ne.s32.totalorder %s36, %s39
      %p48 = scmp.eq.s32.totalorder %s19, 1
      %p49 = por %p47, %p48
      %p50 = scmp.ne.s32.totalorder %s39, %s40
      %p51 = scmp.eq.s32.totalorder %s19, 0
      %p52 = por %p50, %p51
      %p53 = scmp.ne.s32.totalorder %s39, %s40
      %p54 = scmp.eq.s32.totalorder %s20, 1
      %p55 = por %p53, %p54
      %p57 = scmp.ne.s32.totalorder %s40, %s56
      %p58 = scmp.eq.s32.totalorder %s20, 0
      %p59 = por %p57, %p58
      %s61 = sadd.s32 %s60, 1
      %p64 = scmp.eq.s32.totalorder %s14, 1
      %p65 = scmp.ne.s32.totalorder %s60, %s62
      %p66 = scmp.eq.s32.totalorder %s14, 0
      %p67 = por %p65, %p66
      %p68 = scmp.ne.s32.totalorder %s60, %s62
      %p69 = scmp.eq.s32.totalorder %s19, 1
      %p70 = por %p68, %p69
      %p71 = scmp.ne.s32.totalorder %s62, %s63
      %p72 = scmp.eq.s32.totalorder %s19, 0
      %p73 = por %p71, %p72
      %p74 = scmp.ne.s32.totalorder %s62, %s63
      %p75 = scmp.eq.s32.totalorder %s20, 1
      %p76 = por %p74, %p75
      %p78 = scmp.ne.s32.totalorder %s63, %s77
      %p79 = scmp.eq.s32.totalorder %s20, 0
      %p80 = por %p78, %p79
      %s82 = sadd.s32 %s81, 1
      %p85 = scmp.eq.s32.totalorder %s14, 1
      %p86 = scmp.ne.s32.totalorder %s81, %s83
      %p87 = scmp.eq.s32.totalorder %s14, 0
      %p88 = por %p86, %p87
      %p89 = scmp.ne.s32.totalorder %s81, %s83
      %p90 = scmp.eq.s32.totalorder %s19, 1
      %p91 = por %p89, %p90
      %p92 = scmp.ne.s32.totalorder %s83, %s84
      %p93 = scmp.eq.s32.totalorder %s19, 0
      %p94 = por %p92, %p93
      %p95 = scmp.ne.s32.totalorder %s83, %s84
      %p96 = scmp.eq.s32.totalorder %s20, 1
      %p97 = por %p95, %p96
      %p99 = scmp.ne.s32.totalorder %s84, %s98
      %p100 = scmp.eq.s32.totalorder %s20, 0
      %p101 = por %p99, %p100
      %s102 = ssub.s32 %s22, %s29
      %p103 = scmp.eq.s32.totalorder %s102, 0
      %s105 = sadd.s32 %s104, 1
      %s106 = scalar_select %p103, %s104, %s105
      %p109 = pneg %p103
      %p110 = scmp.eq.s32.totalorder %s14, 1
      %p111 = por %p109, %p110
      %p112 = scmp.ne.s32.totalorder %s104, %s107
      %p113 = scmp.eq.s32.totalorder %s14, 0
      %p114 = por %p112, %p113
      %p115 = scmp.ne.s32.totalorder %s104, %s107
      %p116 = scmp.eq.s32.totalorder %s19, 1
      %p117 = por %p115, %p116
      %p118 = scmp.ne.s32.totalorder %s107, %s108
      %p119 = scmp.eq.s32.totalorder %s19, 0
      %p120 = por %p118, %p119
      %p121 = scmp.ne.s32.totalorder %s107, %s108
      %p122 = scmp.eq.s32.totalorder %s20, 1
      %p123 = por %p121, %p122
      %p125 = scmp.ne.s32.totalorder %s108, %s124
      %p126 = scmp.eq.s32.totalorder %s20, 0
      %p127 = por %p125, %p126
      %s128 = ssub.s32 %s22, %s29
      %p129 = scmp.eq.s32.totalorder %s128, 0
      %s131 = sadd.s32 %s130, 1
      %s132 = scalar_select %p129, %s130, %s131
      %p135 = pneg %p129
      %p136 = scmp.eq.s32.totalorder %s14, 1
      %p137 = por %p135, %p136
      %p138 = scmp.ne.s32.totalorder %s130, %s133
      %p139 = scmp.eq.s32.totalorder %s14, 0
      %p140 = por %p138, %p139
      %p141 = scmp.ne.s32.totalorder %s130, %s133
      %p142 = scmp.eq.s32.totalorder %s19, 1
      %p143 = por %p141, %p142
      %p144 = scmp.ne.s32.totalorder %s133, %s134
      %p145 = scmp.eq.s32.totalorder %s19, 0
      %p146 = por %p144, %p145
      %p147 = scmp.ne.s32.totalorder %s133, %s134
      %p148 = scmp.eq.s32.totalorder %s20, 1
      %p149 = por %p147, %p148
      %p151 = scmp.ne.s32.totalorder %s134, %s150
      %p152 = scmp.eq.s32.totalorder %s20, 0
      %p153 = por %p151, %p152
      %s154 = ssub.s32 %s21, %s33
      %s155 = ssub.s32 %s22, %s29
      %s156 = sor.u32 %s154, %s155
      %p157 = scmp.eq.s32.totalorder %s156, 0
      %s159 = sadd.s32 %s158, 1
      %s160 = scalar_select %p157, %s158, %s159
      %p163 = pneg %p157
      %p164 = scmp.eq.s32.totalorder %s14, 1
      %p165 = por %p163, %p164
      %p166 = scmp.ne.s32.totalorder %s158, %s161
      %p167 = scmp.eq.s32.totalorder %s14, 0
      %p168 = por %p166, %p167
      %p169 = scmp.ne.s32.totalorder %s158, %s161
      %p170 = scmp.eq.s32.totalorder %s19, 1
      %p171 = por %p169, %p170
      %p172 = scmp.ne.s32.totalorder %s161, %s162
      %p173 = scmp.eq.s32.totalorder %s19, 0
      %p174 = por %p172, %p173
      %p175 = scmp.ne.s32.totalorder %s161, %s162
      %p176 = scmp.eq.s32.totalorder %s20, 1
      %p177 = por %p175, %p176
      %p179 = scmp.ne.s32.totalorder %s162, %s178
      %p180 = scmp.eq.s32.totalorder %s20, 0
      %p181 = por %p179, %p180
      %p182 = scmp.le.s32.totalorder 1, %s14
      %p183 = scmp.lt.s32.totalorder %s14, 3
      %p184 = pnand %p182, %p183
      %p185 = pneg %p184
      // Predicated region
      $region9: #{_adapter_forward_impl.1} parent=5 // pred_check
        _
      $region10: #{_adapter_forward_impl.1} parent=5 // pred_check_branch
        %187 = sbr.rel (%p184) target = $region12
      $region11: #{_adapter_forward_impl.1} parent=5 // pred_region
        %s188 = ssub.s32 %s14, 1
        // Predicated region
        $region13: #{_adapter_forward_impl.1} parent=11 // pred_check
          %p189 = pneg %p73
        $region14: #{_adapter_forward_impl.1} parent=11 // pred_check_branch
          %191 = sbr.rel (%p189) target = $region16
        $region15: #{_adapter_forward_impl.1} parent=11 // pred_region
          _
        $region16: #{_adapter_forward_impl.1} parent=11 // pred_fallthru
          _
        // Predicated region
        $region17: #{_adapter_forward_impl.1} parent=11 // pred_check
          %p192 = pneg %p94
        $region18: #{_adapter_forward_impl.1} parent=11 // pred_check_branch
          %194 = sbr.rel (%p192) target = $region20
        $region19: #{_adapter_forward_impl.1} parent=11 // pred_region
          _
        $region20: #{_adapter_forward_impl.1} parent=11 // pred_fallthru
          _
        // Predicated region
        $region21: #{_adapter_forward_impl.1} parent=11 // pred_check
          %p195 = pneg %p120
        $region22: #{_adapter_forward_impl.1} parent=11 // pred_check_branch
          %197 = sbr.rel (%p195) target = $region24
        $region23: #{_adapter_forward_impl.1} parent=11 // pred_region
          %p198 = scmp.lt.s32.totalorder %s24, 0
          %s199 = scalar_select %p198, %s24, 0
          %s200 = smul.addr %s199, 8
          %s201 = scalar_lea.vmem %s3, %s200
        $region24: #{_adapter_forward_impl.1} parent=11 // pred_fallthru
          _
        // Predicated region
        $region25: #{_adapter_forward_impl.1} parent=11 // pred_check
          %p202 = pneg %p146
        $region26: #{_adapter_forward_impl.1} parent=11 // pred_check_branch
          %204 = sbr.rel (%p202) target = $region28
        $region27: #{_adapter_forward_impl.1} parent=11 // pred_region
          %p205 = scmp.lt.s32.totalorder %s24, 0
          %s206 = scalar_select %p205, %s24, 0
          %s207 = scalar_lea.vmem %s4, %s206
        $region28: #{_adapter_forward_impl.1} parent=11 // pred_fallthru
          _
      $region12: #{_adapter_forward_impl.1} parent=5 // pred_fallthru
        _
      %p208 = scmp.lt.s32.totalorder %s14, 2
      // Predicated region
      $region29: #{_adapter_forward_impl.1} parent=5 // pred_check
        %p209 = pneg %p208
      $region30: #{_adapter_forward_impl.1} parent=5 // pred_check_branch
        %211 = sbr.rel (%p209) target = $region32
      $region31: #{_adapter_forward_impl.1} parent=5 // pred_region
        // Predicated region
        $region33: #{_adapter_forward_impl.1} parent=31 // pred_check
          %p212 = pneg %p46
        $region34: #{_adapter_forward_impl.1} parent=31 // pred_check_branch
          %214 = sbr.rel (%p212) target = $region36
        $region35: #{_adapter_forward_impl.1} parent=31 // pred_region
          %p215 = scmp.lt.s32.totalorder %s21, 1
          %s216 = scalar_select %p215, %s21, 1
          %s217 = smul.addr %s216, 8
          %s218 = scalar_lea.vmem %s0, %s217
        $region36: #{_adapter_forward_impl.1} parent=31 // pred_fallthru
          _
      $region32: #{_adapter_forward_impl.1} parent=5 // pred_fallthru
        _
      %p219 = scmp.le.s32.totalorder 1, %s14
      %p220 = scmp.lt.s32.totalorder %s14, 3
      %p221 = pnand %p219, %p220
      %p222 = pneg %p221
      // Predicated region
      $region37: #{_adapter_forward_impl.1} parent=5 // pred_check
        _
      $region38: #{_adapter_forward_impl.1} parent=5 // pred_check_branch
        %224 = sbr.rel (%p221) target = $region40
      $region39: #{_adapter_forward_impl.1} parent=5 // pred_region
        %s225 = ssub.s32 %s14, 1
        %p226 = scmp.lt.s32.totalorder %s23, 1
        %s227 = scalar_select %p226, %s23, 1
        %s228 = smul.addr %s227, 8
        %s229 = scalar_lea.vmem %s0, %s228
        %p230 = pneg %p52
        %p231 = pneg %p49
        %p232 = pneg %p73
        %p233 = pneg %p70
        %p234 = pneg %p94
        %p235 = pneg %p91
        %p236 = scmp.lt.s32.totalorder %s24, 0
        %s237 = scalar_select %p236, %s24, 0
        %s238 = smul.addr %s237, 8
        %s239 = scalar_lea.vmem %s3, %s238
        %p240 = pneg %p120
        %p241 = pneg %p117
        %p242 = scmp.lt.s32.totalorder %s24, 0
        %s243 = scalar_select %p242, %s24, 0
        %s244 = scalar_lea.vmem %s4, %s243
        %p245 = pneg %p146
        %p246 = pneg %p143
        %p247 = pneg %p174
        %p248 = pneg %p171
        %s249 = sand.u32 %s161, 1
        %s250 = scalar_lea.sflag [#allocation4], %s249
        %s251 = sand.u32 %s161, 1
        %s252 = smul.addr %s251, 8
        %s253 = scalar_lea.vmem [#allocation3], %s252
        %p254 = scmp.lt.s32.totalorder %s23, 1
        %s255 = scalar_select %p254, %s23, 1
        %s256 = smul.addr %s255, 8
        %s257 = scalar_lea.vmem %s0, %s256
        %p258 = scmp.lt.s32.totalorder %s24, 0
        %s259 = scalar_select %p258, %s24, 0
        %s260 = smul.addr %s259, 8
        %s261 = scalar_lea.vmem %s3, %s260
        %p262 = scmp.lt.s32.totalorder %s24, 0
        %s263 = scalar_select %p262, %s24, 0
        %s264 = scalar_lea.vmem %s4, %s263
        %p265 = scmp.eq.s32.totalorder %s24, 0
        // Predicated region
        $region41: #{_adapter_forward_impl.1} parent=39 // pred_check
          %p266 = pneg %p265
        $region42: #{_adapter_forward_impl.1} parent=39 // pred_check_branch
          %268 = sbr.rel (%p266) target = $region44
        $region43: #{_adapter_forward_impl.1} parent=39 // pred_region
          %v269 = vld [vmem:[%s257] sm:$0xff]
          %v270 = vld [vmem:[%s1] sm:$0xff]
          %v271 = vld [vmem:[%s1 + $0x8] sm:$0xff]
          %v272 = vld [vmem:[%s1 + $0x10] sm:$0xff]
          %v273 = vld [vmem:[%s1 + $0x18] sm:$0xff]
          %v274 = vld [vmem:[%s2] sm:$0x1]
          %v276 = vlaneseq
          %v277 = vshrl.u32 %v276, 7
          %v278 = vsub.s32 0, %v277
          %v279 = vrot.slane %v274, %v278
          %vm281 = vcmask 261120
          %v283 = vsel %vm281, %v269, 0
          %285 = vmatprep.subr.mxu0 0.0
          %286 = vmatpush1.msra.mxu0 0.0
          %287 = vmatprep.subr.mxu0 0.0
          %288 = vmatpush1.msra.mxu0 0.0
          %289 = vmatprep.subr.mxu0 0.0
          %290 = vmatpush1.msra.mxu0 0.0
          %291 = vmatprep.subr.mxu0 0.0
          %292 = vmatpush1.msra.mxu0 0.0
          %293 = vmatprep.subr.mxu0 0.0
          %294 = vmatpush1.msra.mxu0 0.0
          %295 = vmatprep.subr.mxu0 0.0
          %296 = vmatpush1.msra.mxu0 0.0
          %297 = vmatprep.subr.mxu0 0.0
          %298 = vmatpush1.msra.mxu0 0.0
          %299 = vmatprep.subr.mxu0 0.0
          %300 = vmatpush1.msra.mxu0 0.0
          %301 = vmatprep.subr.mxu0 0.0
          %302 = vmatpush1.msra.mxu0 0.0
          %303 = vmatprep.subr.mxu0 0.0
          %304 = vmatpush1.msra.mxu0 0.0
          %305 = vmatprep.subr.mxu0 0.0
          %306 = vmatpush1.msra.mxu0 0.0
          %307 = vmatprep.subr.mxu0 0.0
          %308 = vmatpush1.msra.mxu0 0.0
          %309 = vmatprep.subr.mxu0 0.0
          %310 = vmatpush1.msra.mxu0 %v273
          %311 = vmatprep.subr.mxu0 0.0
          %312 = vmatpush1.msra.mxu0 %v272
          %313 = vmatprep.subr.mxu0 0.0
          %314 = vmatpush1.msra.mxu0 %v271
          %315 = vmatprep.subr.mxu0 0.0
          %316 = vmatpush1.msra.mxu0 %v270
          %317 = vmatprep.subr.mxu0 0.0
          %318 = vmatpush2.msra.mxu0 0.0
          %319 = vmatprep.subr.mxu0 0.0
          %320 = vmatpush2.msra.mxu0 0.0
          %321 = vmatprep.subr.mxu0 0.0
          %322 = vmatpush2.msra.mxu0 0.0
          %323 = vmatprep.subr.mxu0 0.0
          %324 = vmatpush2.msra.mxu0 0.0
          %325 = vmatprep.subr.mxu0 0.0
          %326 = vmatpush2.msra.mxu0 0.0
          %327 = vmatprep.subr.mxu0 0.0
          %328 = vmatpush2.msra.mxu0 0.0
          %329 = vmatprep.subr.mxu0 0.0
          %330 = vmatpush2.msra.mxu0 0.0
          %331 = vmatprep.subr.mxu0 0.0
          %332 = vmatpush2.msra.mxu0 0.0
          %333 = vmatprep.subr.mxu0 0.0
          %334 = vmatpush2.msra.mxu0 0.0
          %335 = vmatprep.subr.mxu0 0.0
          %336 = vmatpush2.msra.mxu0 0.0
          %337 = vmatprep.subr.mxu0 0.0
          %338 = vmatpush2.msra.mxu0 0.0
          %339 = vmatprep.subr.mxu0 0.0
          %340 = vmatpush2.msra.mxu0 0.0
          %341 = vmatprep.subr.mxu0 0.0
          %342 = vmatpush2.msra.mxu0 0.0
          %343 = vmatprep.subr.mxu0 0.0
          %344 = vmatpush2.msra.mxu0 0.0
          %345 = vmatprep.subr.mxu0 0.0
          %346 = vmatpush2.msra.mxu0 0.0
          %347 = vmatprep.subr.mxu0 0.0
          %348 = vmatpush2.msra.mxu0 0.0
          %349 = vmatprep.mubr.f32.mxu0 0.0
          %350 = vmatmul.mubr.f32.gmra.mxu0 %v283
          %v351 = vpop.f32.mrf.mxu0
          %v352 = vadd.f32 %v279, %v351
          %v353 = vpop.f32.mrf.mxu0
          %354 = vdwg.mxu0
          %v355 = vmul.f32 %v352, 0.5
          %v356 = vmul.f32 %v352, 0.70710677
          %v357 = verf.f32.pop %v356
          %v358 = vadd.f32 %v357, 1.0
          %v359 = vmul.f32 %v355, %v358
          %vm360 = vcmask 130048
          %361 = vst.msk [vmem:[#allocation2] sm:$0xff] %vm360, %v359
        $region44: #{_adapter_forward_impl.1} parent=39 // pred_fallthru
          _
        %v362 = vld [vmem:[#allocation2] sm:$0xff]
        %v363 = vld [vmem:[%s261] sm:$0xff]
        %v364 = vld [vmem:[%s261 + $0x8] sm:$0xff]
        %v365 = vld [vmem:[%s264] sm:$0x1]
        %v367 = vlaneseq
        %v368 = vshrl.u32 %v367, 7
        %v369 = vsub.s32 0, %v368
        %v370 = vrot.slane %v365, %v369
        %vm372 = vcmask 130048
        %v374 = vsel %vm372, %v362, 0
        %376 = vmatprep.subr.mxu0 0.0
        %377 = vmatpush1.msra.mxu0 0.0
        %378 = vmatprep.subr.mxu0 0.0
        %379 = vmatpush1.msra.mxu0 0.0
        %380 = vmatprep.subr.mxu0 0.0
        %381 = vmatpush1.msra.mxu0 0.0
        %382 = vmatprep.subr.mxu0 0.0
        %383 = vmatpush1.msra.mxu0 0.0
        %384 = vmatprep.subr.mxu0 0.0
        %385 = vmatpush1.msra.mxu0 0.0
        %386 = vmatprep.subr.mxu0 0.0
        %387 = vmatpush1.msra.mxu0 0.0
        %388 = vmatprep.subr.mxu0 0.0
        %389 = vmatpush1.msra.mxu0 0.0
        %390 = vmatprep.subr.mxu0 0.0
        %391 = vmatpush1.msra.mxu0 0.0
        %392 = vmatprep.subr.mxu0 0.0
        %393 = vmatpush1.msra.mxu0 0.0
        %394 = vmatprep.subr.mxu0 0.0
        %395 = vmatpush1.msra.mxu0 0.0
        %396 = vmatprep.subr.mxu0 0.0
        %397 = vmatpush1.msra.mxu0 0.0
        %398 = vmatprep.subr.mxu0 0.0
        %399 = vmatpush1.msra.mxu0 0.0
        %400 = vmatprep.subr.mxu0 0.0
        %401 = vmatpush1.msra.mxu0 0.0
        %402 = vmatprep.subr.mxu0 0.0
        %403 = vmatpush1.msra.mxu0 0.0
        %404 = vmatprep.subr.mxu0 0.0
        %405 = vmatpush1.msra.mxu0 %v364
        %406 = vmatprep.subr.mxu0 0.0
        %407 = vmatpush1.msra.mxu0 %v363
        %408 = vmatprep.subr.mxu0 0.0
        %409 = vmatpush2.msra.mxu0 0.0
        %410 = vmatprep.subr.mxu0 0.0
        %411 = vmatpush2.msra.mxu0 0.0
        %412 = vmatprep.subr.mxu0 0.0
        %413 = vmatpush2.msra.mxu0 0.0
        %414 = vmatprep.subr.mxu0 0.0
        %415 = vmatpush2.msra.mxu0 0.0
        %416 = vmatprep.subr.mxu0 0.0
        %417 = vmatpush2.msra.mxu0 0.0
        %418 = vmatprep.subr.mxu0 0.0
        %419 = vmatpush2.msra.mxu0 0.0
        %420 = vmatprep.subr.mxu0 0.0
        %421 = vmatpush2.msra.mxu0 0.0
        %422 = vmatprep.subr.mxu0 0.0
        %423 = vmatpush2.msra.mxu0 0.0
        %424 = vmatprep.subr.mxu0 0.0
        %425 = vmatpush2.msra.mxu0 0.0
        %426 = vmatprep.subr.mxu0 0.0
        %427 = vmatpush2.msra.mxu0 0.0
        %428 = vmatprep.subr.mxu0 0.0
        %429 = vmatpush2.msra.mxu0 0.0
        %430 = vmatprep.subr.mxu0 0.0
        %431 = vmatpush2.msra.mxu0 0.0
        %432 = vmatprep.subr.mxu0 0.0
        %433 = vmatpush2.msra.mxu0 0.0
        %434 = vmatprep.subr.mxu0 0.0
        %435 = vmatpush2.msra.mxu0 0.0
        %436 = vmatprep.subr.mxu0 0.0
        %437 = vmatpush2.msra.mxu0 0.0
        %438 = vmatprep.subr.mxu0 0.0
        %439 = vmatpush2.msra.mxu0 0.0
        %440 = vmatprep.mubr.f32.mxu0 0.0
        %441 = vmatmul.mubr.f32.gmra.mxu0 %v374
        %v442 = vpop.f32.mrf.mxu0
        %v443 = vadd.f32 %v370, %v442
        %v444 = vpop.f32.mrf.mxu0
        %445 = vdwg.mxu0
        %vm446 = vcmask 261120
        %447 = vst.msk [vmem:[%s253] sm:$0xff] %vm446, %v443
        %s448 = sand.u32 %s161, 1
        %s449 = scalar_lea.sflag [#allocation4], %s448
        %s450 = sand.u32 %s161, 1
        %s451 = smul.addr %s450, 8
        %s452 = scalar_lea.vmem [#allocation3], %s451
        // Predicated region
        $region45: #{_adapter_forward_impl.1} parent=39 // pred_check
          %p453 = pneg %p171
        $region46: #{_adapter_forward_impl.1} parent=39 // pred_check_branch
          %455 = sbr.rel (%p453) target = $region48
        $region47: #{_adapter_forward_impl.1} parent=39 // pred_region
          %s457 = ssub.s32 128, 128
          %458 = vsyncadd %s449, %s457
          %s459 = sadd.s32 %s24, %s23
          %s460 = smul.addr %s459, 128
          %s461 = scalar_lea.hbm %s5, %s460
          %s463 = sshll.u32 %s452, 4
          %s464 = int_to_ptr.vmem [resolvable:$true] %s463
          %466 = dma.vmem_to_hbm [thread:$0]  %s464, 128, %s461, %s449
        $region48: #{_adapter_forward_impl.1} parent=39 // pred_fallthru
          _
      $region40: #{_adapter_forward_impl.1} parent=5 // pred_fallthru
        _
      %p467 = scmp.le.s32.totalorder 2, %s14
      // Predicated region
      $region49: #{_adapter_forward_impl.1} parent=5 // pred_check
        %p468 = pneg %p467
      $region50: #{_adapter_forward_impl.1} parent=5 // pred_check_branch
        %470 = sbr.rel (%p468) target = $region52
      $region51: #{_adapter_forward_impl.1} parent=5 // pred_region
        %s471 = ssub.s32 %s14, 2
        // Predicated region
        $region53: #{_adapter_forward_impl.1} parent=51 // pred_check
          %p472 = pneg %p177
        $region54: #{_adapter_forward_impl.1} parent=51 // pred_check_branch
          %474 = sbr.rel (%p472) target = $region56
        $region55: #{_adapter_forward_impl.1} parent=51 // pred_region
          %s475 = sand.u32 %s162, 1
          %s476 = scalar_lea.sflag [#allocation4], %s475
          %s477 = sand.u32 %s162, 1
          %s478 = smul.addr %s477, 8
          %s479 = scalar_lea.vmem [#allocation3], %s478
          %480 = dma.done %s476, 128
        $region56: #{_adapter_forward_impl.1} parent=51 // pred_fallthru
          _
      $region52: #{_adapter_forward_impl.1} parent=5 // pred_fallthru
        _
    $region6: #{_adapter_forward_impl.1} parent=1 // loop_footer
      %s18 = sadd.s32 1, %s14
    $region7: #{_adapter_forward_impl.1} parent=1 // loop_footer_branch
      %13 = sbr.rel target = $region3
    $region8: #{_adapter_forward_impl.1} parent=1 // loop_exit
      _
    %481 = vsyncpa [#allocation4], 1
    %s482 = scalar_lea.sflag [#allocation4], 1
    %483 = vsyncpa %s482, 1

</llo_original>
